<compile_context>
chip_gen: v5e
topology: v5e:2x2
jax: 0.10.0
libtpu: 0.0.40
codegen_flags: <defaults>
</compile_context>

<pallas_src>
import jax
import jax.numpy as jnp
from jax.experimental import pallas as pl
from jax.experimental.pallas import tpu as pltpu


_LANE_CANDIDATES = (4096, 2048, 1024, 512, 256, 128)   # lane-dense widths
_TARGET_BLOCK_BYTES = 8 * 1024 * 1024                  # ~8 MiB per block
_MIN_SPLIT_BYTES = 1 * 1024 * 1024                     # split for pipelining above this
_MIN_GRID_BLOCKS = 4                                   # >= 2 steps per core on 2-TC chips


def _pick_vmem_limit_bytes():
    """Generation-aware VMEM limit: ~3/4 of physical, capped at 64 MiB."""
    phys = None
    try:
        info = pltpu.get_tpu_info()
        phys = getattr(info, "vmem_capacity_bytes", None)
    except Exception:
        phys = None
    if not phys:
        # Safe on every known generation (v7x physical VMEM is 64 MiB).
        return 48 * 1024 * 1024
    return int(min(64 * 1024 * 1024, (int(phys) * 3) // 4))


def _quant_kernel(scal_ref, x_ref, o_ref):
    # scal_ref: SMEM (3,) f32 = [h, |h|, sign(h)] with h = 0.5*alpha.
    # x_ref / o_ref: VMEM tiles.
    x = x_ref[...]
    dt = jnp.dtype(x_ref.dtype)
    if jnp.issubdtype(dt, jnp.floating) and dt.itemsize == 2:
        # bf16 / f16: native-dtype 3-op path (v6e/v7x have bf16 VALU).
        # sign(h) * clamp(x, -|h|, |h|) == 0.5*(|x+h| - |x-h|) for all h.
        habs = scal_ref[1].astype(x.dtype)
        sgn = scal_ref[2].astype(x.dtype)
        y = sgn * jnp.minimum(jnp.maximum(x, -habs), habs)
        o_ref[...] = y.astype(o_ref.dtype)
    else:
        # f32 (and anything else): exact module formula, bit-identical to the
        # PyTorch forward.
        h = scal_ref[0]
        xf = x.astype(jnp.float32)
        y = 0.5 * (jnp.abs(xf + h) - jnp.abs(xf - h))
        o_ref[...] = y.astype(o_ref.dtype)


@jax.jit
def quant_layer_forward(x, alpha):
    """QuantLayer forward. x: any shape/float dtype. alpha: scalar parameter."""
    orig_shape = x.shape
    out_dtype = x.dtype
    n = x.size
    if n == 0:
        return x

    itemsize = jnp.dtype(out_dtype).itemsize
    flat = x.reshape(-1)

    # Widest lane dim (multiple of 128) dividing n -> no padding, free reshape,
    # unmasked lane-dense stores.
    lane = next((w for w in _LANE_CANDIDATES if n % w == 0), None)

    trailing_pad = 0
    if lane is None:
        if n * itemsize <= _TARGET_BLOCK_BYTES:
            # Ragged (n % 128 != 0) but small: single (1, n) block.  The last
            # block dim equals the full array dim so no divisibility
            # requirement; partial tail vreg stores are masked in-kernel.
            # Zero extra HBM passes (no pad, no slice).
            lane = n
        else:
            # TODO(synk): very large ragged tensors still use a pad+slice
            # fallback; could be replaced by a 1-D masked-tail kernel.
            lane = 128
            trailing_pad = (-n) % lane
            flat = jnp.pad(flat, (0, trailing_pad))

    rows = (n + trailing_pad) // lane
    # Sublane packing granularity: 8 rows (f32), 16 (bf16/f16), 32 (8-bit).
    row_mult = max(8, 32 // max(itemsize, 1))

    row_bytes = lane * itemsize
    total_bytes = rows * row_bytes
    # ~8 MiB blocks, rounded down to the row granularity.
    ideal_rows = max(row_mult, (_TARGET_BLOCK_BYTES // row_bytes) // row_mult * row_mult)

    if rows <= 1 or total_bytes < _MIN_SPLIT_BYTES:
        block_rows = rows                      # tiny tensor: one (few) block(s)
    else:
        # Target at least _MIN_GRID_BLOCKS grid steps (2 per TensorCore on
        # 2-TC chips -> DMA in / writeback pipeline per core), capped at the
        # ~8 MiB ideal block size.
        target_rows = pl.cdiv(pl.cdiv(rows, _MIN_GRID_BLOCKS), row_mult) * row_mult
        block_rows = max(row_mult, min(ideal_rows, target_rows))

    grid = (pl.cdiv(rows, block_rows),)        # ragged last block masked by Pallas

    x2d = flat.reshape(rows, lane)

    h = 0.5 * jnp.asarray(alpha, dtype=jnp.float32)
    scal = jnp.stack([h, jnp.abs(h), jnp.sign(h)])   # (3,) f32 -> SMEM

    out2d = pl.pallas_call(
        _quant_kernel,
        out_shape=jax.ShapeDtypeStruct((rows, lane), out_dtype),
        grid=grid,
        in_specs=[
            pl.BlockSpec(memory_space=pltpu.SMEM),               # [h, |h|, sign(h)]
            pl.BlockSpec((block_rows, lane), lambda i: (i, 0)),  # x tile
        ],
        out_specs=pl.BlockSpec((block_rows, lane), lambda i: (i, 0)),
        compiler_params=pltpu.CompilerParams(
            dimension_semantics=("parallel",),
            vmem_limit_bytes=_pick_vmem_limit_bytes(),
        ),
        cost_estimate=pl.CostEstimate(
            flops=int(6 * n),
            transcendentals=0,
            bytes_accessed=int(2 * n * itemsize),
        ),
    )(scal, x2d)

    out = out2d.reshape(-1)
    if trailing_pad:
        out = out[:n]
    return out.reshape(orig_shape)


def _reference(x, alpha):
    a = jnp.float32(alpha)
    xf = x.astype(jnp.float32)
    return (0.5 * (jnp.abs(xf + 0.5 * a) - jnp.abs(xf - 0.5 * a))).astype(x.dtype)


if __name__ == "__main__":
    key = jax.random.PRNGKey(0)
    alpha = 10.0  # deterministic parameter init, matching QuantLayer(alpha=10.0)

    # Main NCHW case (n divisible by 128 -> zero-copy lane-dense path).
    x = jax.random.normal(key, (2, 4, 16, 16), dtype=jnp.float32) * 8.0
    y = jax.block_until_ready(quant_layer_forward(x, alpha))
    y_ref = _reference(x, alpha)
    assert y.shape == x.shape and y.dtype == x.dtype
    assert jnp.allclose(y, y_ref, atol=1e-6, rtol=1e-6), "mismatch vs reference (main)"

    # Ragged case (n NOT divisible by 128): single (1, n) block, no pad/slice.
    x2 = jax.random.normal(jax.random.PRNGKey(1), (2, 3, 15, 15), dtype=jnp.float32) * 8.0
    y2 = jax.block_until_ready(quant_layer_forward(x2, alpha))
    y2_ref = _reference(x2, alpha)
    assert y2.shape == x2.shape and y2.dtype == x2.dtype
    assert jnp.allclose(y2, y2_ref, atol=1e-6, rtol=1e-6), "mismatch vs reference (ragged)"

    # bf16 case exercises the native-dtype clamp path.
    x3 = (jax.random.normal(jax.random.PRNGKey(2), (2, 4, 16, 16), dtype=jnp.float32) * 8.0
          ).astype(jnp.bfloat16)
    y3 = jax.block_until_ready(quant_layer_forward(x3, alpha))
    y3_ref = _reference(x3, alpha)
    assert y3.shape == x3.shape and y3.dtype == x3.dtype
    assert jnp.allclose(y3.astype(jnp.float32), y3_ref.astype(jnp.float32),
                        atol=5e-2, rtol=5e-2), "mismatch vs reference (bf16)"

    # Medium tensor (2 MiB) exercises the multi-block (>=4 steps) split path.
    x4 = jax.random.normal(jax.random.PRNGKey(3), (4, 32, 64, 64), dtype=jnp.float32) * 8.0
    y4 = jax.block_until_ready(quant_layer_forward(x4, alpha))
    y4_ref = _reference(x4, alpha)
    assert y4.shape == x4.shape and y4.dtype == x4.dtype
    assert jnp.allclose(y4, y4_ref, atol=1e-6, rtol=1e-6), "mismatch vs reference (medium)"

    print("KERNEL_OK")
</pallas_src>

<mosaic_0001>
module attributes {stable_mosaic.version = 11 : i64} {
  func.func @_quant_kernel(%arg0: i32, %arg1: memref<3xf32, #tpu.memory_space<smem>>, %arg2: memref<1x2048xf32, #tpu.memory_space<vmem>>, %arg3: memref<1x2048xf32, #tpu.memory_space<vmem>>) attributes {dimension_semantics = [#tpu.dimension_semantics<parallel>], iteration_bounds = array<i64: 1>, scalar_prefetch = 0 : i64, scratch_operands = 0 : i64, tpu.core_type = #tpu.core_type<tc>, window_params = [{transform_indices = @transform_0, window_bounds = array<i64: 3>}, {transform_indices = @transform_1, window_bounds = array<i64: 1, 2048>}, {transform_indices = @transform_2, window_bounds = array<i64: 1, 2048>}]} {
    %c0 = arith.constant 0 : index
    %c0_0 = arith.constant 0 : index
    %0 = vector.load %arg2[%c0, %c0_0] : memref<1x2048xf32, #tpu.memory_space<vmem>>, vector<1x2048xf32>
    %c0_1 = arith.constant 0 : index
    %1 = memref.load %arg1[%c0_1] : memref<3xf32, #tpu.memory_space<smem>>
    %2 = vector.broadcast %1 : f32 to vector<1x2048xf32>
    %3 = arith.addf %0, %2 : vector<1x2048xf32>
    %4 = math.absf %3 : vector<1x2048xf32>
    %5 = vector.broadcast %1 : f32 to vector<1x2048xf32>
    %6 = arith.subf %0, %5 : vector<1x2048xf32>
    %7 = math.absf %6 : vector<1x2048xf32>
    %8 = arith.subf %4, %7 : vector<1x2048xf32>
    %cst = arith.constant 5.000000e-01 : f32
    %9 = vector.broadcast %cst : f32 to vector<1x2048xf32>
    %10 = arith.mulf %9, %8 : vector<1x2048xf32>
    %c0_2 = arith.constant 0 : index
    %c0_3 = arith.constant 0 : index
    %11 = vector.load %arg3[%c0_2, %c0_3] : memref<1x2048xf32, #tpu.memory_space<vmem>>, vector<1x2048xf32>
    tpu.vector_store %arg3[%c0_2, %c0_3], %10 {strides = array<i32>} : memref<1x2048xf32, #tpu.memory_space<vmem>>, vector<1x2048xf32>,
    return
  }
  func.func @transform_0(%arg0: i32) -> i32 {
    %c0_i32 = arith.constant 0 : i32
    %c0_i32_0 = arith.constant 0 : i32
    return %c0_i32 : i32
  }
  func.func @transform_1(%arg0: i32) -> (i32, i32) {
    %c0_i32 = arith.constant 0 : i32
    %c0_i32_0 = arith.constant 0 : i32
    return %arg0, %c0_i32 : i32, i32
  }
  func.func @transform_2(%arg0: i32) -> (i32, i32) {
    %c0_i32 = arith.constant 0 : i32
    %c0_i32_0 = arith.constant 0 : i32
    return %arg0, %c0_i32 : i32, i32
  }
}

</mosaic_0001>

<llo_original>
// kernel: quant_layer_forward.1
$region0: #{quant_layer_forward.1}
  #allocation0 [shape = 'u32[]', space=smem, size = 0x4, offset = 0x4, fixed_abs, tag = 'smem constant byte address 0x4 - core index']
  #allocation1 [shape = 'u32[72,128]{1,0:T(1,128)}', space=vmem, size = 0x9000, scoped, tag = 'internal scratch']
  %s0 = inlined_call_operand.vmem [shape: f32[3], index: 0, kind: input, shape index: {}]
  %s1 = inlined_call_operand.vmem [shape: f32[1,2048], index: 1, kind: input, shape index: {}]
  %s2 = inlined_call_operand.vmem [shape: f32[1,2048], index: 2, kind: output, shape index: {}]
  %s3 = sld [smem:[#allocation0]]
  $region22: #{quant_layer_forward.1} parent=0
    _
  %s5 = ssub.s32 1, %s3
  %s6 = scalar_select 0, %s5, %s3
  $region1: #{quant_layer_forward.1} parent=0
    #allocation2 [shape = 'u8[512]{0}', space=smem, size = 0x200, scoped, tag = 'input window, operand 0, single buffered']
    #allocation3 [shape = 's32[1]{0}', space=sflag, size = 0x4, scoped, tag = 'scoped memory for quant_layer_forward.1']
    %7 = vsyncpa [#allocation3], 0
    // Predicated region
    $region2: #{quant_layer_forward.1} parent=1 // pred_check
      _
    $region3: #{quant_layer_forward.1} parent=1 // pred_check_branch
      %9 = sbr.rel (0) target = $region5
    $region4: #{quant_layer_forward.1} parent=1 // pred_region
      %11 = vsyncadd [#allocation3], 0
      %s13 = sshll.u32 %s0, 4
      %s14 = int_to_ptr.vmem [resolvable:$true] %s13
      %16 = dma.vmem_to_smem %s14, 16, [#allocation2], [#allocation3]
    $region5: #{quant_layer_forward.1} parent=1 // pred_fallthru
      _
    // Predicated region
    $region6: #{quant_layer_forward.1} parent=1 // pred_check
      _
    $region7: #{quant_layer_forward.1} parent=1 // pred_check_branch
      %18 = sbr.rel (0) target = $region9
    $region8: #{quant_layer_forward.1} parent=1 // pred_region
      _
    $region9: #{quant_layer_forward.1} parent=1 // pred_fallthru
      _
    // Predicated region
    $region10: #{quant_layer_forward.1} parent=1 // pred_check
      _
    $region11: #{quant_layer_forward.1} parent=1 // pred_check_branch
      %20 = sbr.rel (0) target = $region13
    $region12: #{quant_layer_forward.1} parent=1 // pred_region
      %22 = dma.done [#allocation3], 16
    $region13: #{quant_layer_forward.1} parent=1 // pred_fallthru
      _
    %23 = sfence
    %v24 = vld [vmem:[%s1] sm:$0xff]
    %v25 = vld [vmem:[%s1 + $0x8] sm:$0xff]
    %s26 = sld [smem:[#allocation2]]
    %v27 = vstv %s26
    %v28 = vadd.f32 %v24, %v27
    %v29 = vadd.f32 %v25, %v27
    %v30 = vand.u32 2147483647, %v28
    %v31 = vand.u32 2147483647, %v29
    %v32 = vsub.f32 %v24, %v27
    %v33 = vsub.f32 %v25, %v27
    %v34 = vand.u32 2147483647, %v32
    %v35 = vand.u32 2147483647, %v33
    %v36 = vsub.f32 %v30, %v34
    %v37 = vsub.f32 %v31, %v35
    %v38 = vmul.f32 %v36, 0.5
    %v39 = vmul.f32 %v37, 0.5
    %40 = vst [vmem:[%s2] sm:$0xff] %v38
    %41 = vst [vmem:[%s2 + $0x8] sm:$0xff] %v39
    // Predicated region
    $region14: #{quant_layer_forward.1} parent=1 // pred_check
      _
    $region15: #{quant_layer_forward.1} parent=1 // pred_check_branch
      %43 = sbr.rel (0) target = $region17
    $region16: #{quant_layer_forward.1} parent=1 // pred_region
      _
    $region17: #{quant_layer_forward.1} parent=1 // pred_fallthru
      _
    // Predicated region
    $region18: #{quant_layer_forward.1} parent=1 // pred_check
      _
    $region19: #{quant_layer_forward.1} parent=1 // pred_check_branch
      %45 = sbr.rel (0) target = $region21
    $region20: #{quant_layer_forward.1} parent=1 // pred_region
      _
    $region21: #{quant_layer_forward.1} parent=1 // pred_fallthru
      _
    %46 = vsyncpa [#allocation3], 1

</llo_original>
